<compile_context>
chip_gen: v7x
topology: tpu7x:2x2x1
jax: 0.10.0
libtpu: 0.0.40
codegen_flags: <defaults>
</compile_context>

<pallas_src>
import functools

import jax
import jax.numpy as jnp
from jax.experimental import pallas as pl
from jax.experimental.pallas import tpu as pltpu


def _round_up(n, m):
    return ((n + m - 1) // m) * m


def _encoder_kernel(x_ref, w1_ref, b1_ref, w2_ref, b2_ref, w3_ref, b3_ref,
                    zt_ref):
    """One batch tile.  Activations are feature-major: (features, block_b)."""
    x = x_ref[...]  # (block_b, in_size), bf16

    # layer 1:  h1_t = relu(W1 @ x^T + b1)   -> (h1, block_b)
    # NT dot: contract W1's `in` axis (dim 1) with x's `in` axis (dim 1).
    h = jax.lax.dot_general(
        w1_ref[...], x,
        dimension_numbers=(((1,), (1,)), ((), ())),
        preferred_element_type=jnp.float32)
    h = jnp.maximum(h + b1_ref[...], 0.0)            # f32 bias-add / ReLU

    # layer 2:  h2_t = relu(W2 @ h1_t + b2)  -> (h2, block_b)
    h = jnp.dot(w2_ref[...], h.astype(w2_ref.dtype),
                preferred_element_type=jnp.float32)
    h = jnp.maximum(h + b2_ref[...], 0.0)

    # layer 3:  z_t = relu(W3 @ h2_t + b3)   -> (latent_p, block_b), lane-dense
    # TODO(synk): this K=8, N=block_b push could move to the VPU; keep on MXU
    # until a bundle dump shows the MXU drain on the critical path.
    h = jnp.dot(w3_ref[...], h.astype(w3_ref.dtype),
                preferred_element_type=jnp.float32)
    zt_ref[...] = jnp.maximum(h + b3_ref[...], 0.0).astype(zt_ref.dtype)


@functools.partial(jax.jit, static_argnames=("block_b", "compute_dtype"))
def encoder_forward(x, w1, b1, w2, b2, w3, b3, *, block_b=512,
                    compute_dtype=jnp.bfloat16):
    """x: [B, in_size].  w_i: PyTorch layout [out_i, in_i].  b_i: [out_i]."""
    B, in_size = x.shape
    h1d, h2d, latent = w1.shape[0], w2.shape[0], w3.shape[0]
    out_dtype = x.dtype

    # Pad every layer's output-feature dim up to a sublane multiple (8); zero
    # padding is exactly preserved by relu so results are unchanged.
    p1, p2, p3 = (_round_up(d, 8) for d in (h1d, h2d, latent))

    def pad_w(w, rows, cols):
        return jnp.pad(w, ((0, rows - w.shape[0]), (0, cols - w.shape[1])))

    def pad_b(b, rows):
        return jnp.pad(b, (0, rows - b.shape[0])).reshape(rows, 1)

    # bf16 matmul operands; biases stay f32 (accumulation / epilogue in f32).
    xc = x.astype(compute_dtype)
    w1c = pad_w(w1, p1, in_size).astype(compute_dtype)
    w2c = pad_w(w2, p2, p1).astype(compute_dtype)
    w3c = pad_w(w3, p3, p2).astype(compute_dtype)
    b1c = pad_b(b1, p1).astype(jnp.float32)
    b2c = pad_b(b2, p2).astype(jnp.float32)
    b3c = pad_b(b3, p3).astype(jnp.float32)

    # Clamp / align the batch tile: multiple of 16 (bf16 sublane packing) or
    # the full batch if the batch is smaller than the requested tile.
    if block_b >= B:
        block_b = B
    else:
        block_b = max(16, (block_b // 16) * 16)
    grid = (pl.cdiv(B, block_b),)

    zt = pl.pallas_call(
        _encoder_kernel,
        out_shape=jax.ShapeDtypeStruct((p3, B), out_dtype),
        grid_spec=pltpu.PrefetchScalarGridSpec(
            num_scalar_prefetch=0,
            grid=grid,
            in_specs=[
                # batch-tiled activations
                pl.BlockSpec((block_b, in_size), lambda i: (i, 0)),
                # weights / biases: full arrays, constant block index -> kept
                # resident, no re-DMA across grid steps.
                pl.BlockSpec((p1, in_size), lambda i: (0, 0)),
                pl.BlockSpec((p1, 1), lambda i: (0, 0)),
                pl.BlockSpec((p2, p1), lambda i: (0, 0)),
                pl.BlockSpec((p2, 1), lambda i: (0, 0)),
                pl.BlockSpec((p3, p2), lambda i: (0, 0)),
                pl.BlockSpec((p3, 1), lambda i: (0, 0)),
            ],
            # Lane-dense output slab: (latent_p, block_b), block_b in lanes.
            out_specs=pl.BlockSpec((p3, block_b), lambda i: (0, i)),
        ),
        compiler_params=pltpu.CompilerParams(
            dimension_semantics=("parallel",)),
    )(xc, w1c, b1c, w2c, b2c, w3c, b3c)

    # Drop padded latent rows, back to the PyTorch (B, latent) convention.
    return zt[:latent, :].T


def init_linear_params(key, in_features, out_features):
    """PyTorch-style init: U(-1/sqrt(fan_in), 1/sqrt(fan_in)), native layout."""
    kw, kb = jax.random.split(key)
    bound = 1.0 / (in_features ** 0.5)
    w = jax.random.uniform(kw, (out_features, in_features), jnp.float32,
                           -bound, bound)
    b = jax.random.uniform(kb, (out_features,), jnp.float32, -bound, bound)
    return w, b


def reference_forward(x, w1, b1, w2, b2, w3, b3):
    h = jnp.maximum(x @ w1.T + b1, 0.0)
    h = jnp.maximum(h @ w2.T + b2, 0.0)
    return jnp.maximum(h @ w3.T + b3, 0.0)


if __name__ == "__main__":
    # in_size=32 -> hidden 16 -> 8 -> latent 4; batch 256 so the tiled call
    # has multiple parallel grid steps (exercises both TensorCores on v7x).
    B, in_size, latent_size = 256, 32, 4
    h1d, h2d = in_size // 2, in_size // 4

    key = jax.random.PRNGKey(0)
    kx, k1, k2, k3 = jax.random.split(key, 4)

    x = jax.random.normal(kx, (B, in_size), jnp.float32)
    w1, b1 = init_linear_params(k1, in_size, h1d)
    w2, b2 = init_linear_params(k2, h1d, h2d)
    w3, b3 = init_linear_params(k3, h2d, latent_size)

    z_ref = reference_forward(x, w1, b1, w2, b2, w3, b3)

    # Multi-step grid (grid=(2,)).
    z = jax.block_until_ready(
        encoder_forward(x, w1, b1, w2, b2, w3, b3, block_b=128))
    assert z.shape == (B, latent_size)
    # bf16 matmul operands -> loosened tolerance vs the f32 reference.
    assert jnp.allclose(z, z_ref, atol=4e-2, rtol=4e-2), float(
        jnp.max(jnp.abs(z - z_ref)))

    # Default tile (clamped to B -> single grid step) must also work.
    z2 = jax.block_until_ready(encoder_forward(x, w1, b1, w2, b2, w3, b3))
    assert z2.shape == (B, latent_size)
    assert jnp.allclose(z2, z_ref, atol=4e-2, rtol=4e-2), float(
        jnp.max(jnp.abs(z2 - z_ref)))

    print("KERNEL_OK")
</pallas_src>

<mosaic_0001>
module attributes {stable_mosaic.version = 11 : i64} {
  func.func @_encoder_kernel(%arg0: i32, %arg1: memref<128x32xbf16, #tpu.memory_space<vmem>>, %arg2: memref<16x32xbf16, #tpu.memory_space<vmem>>, %arg3: memref<16x1xf32, #tpu.memory_space<vmem>>, %arg4: memref<8x16xbf16, #tpu.memory_space<vmem>>, %arg5: memref<8x1xf32, #tpu.memory_space<vmem>>, %arg6: memref<8x8xbf16, #tpu.memory_space<vmem>>, %arg7: memref<8x1xf32, #tpu.memory_space<vmem>>, %arg8: memref<8x128xf32, #tpu.memory_space<vmem>>) attributes {dimension_semantics = [#tpu.dimension_semantics<parallel>], iteration_bounds = array<i64: 2>, scalar_prefetch = 0 : i64, scratch_operands = 0 : i64, tpu.core_type = #tpu.core_type<tc>, window_params = [{transform_indices = @transform_0, window_bounds = array<i64: 128, 32>}, {pipeline_mode = #tpu.pipeline_mode<synchronous>, transform_indices = @transform_1, window_bounds = array<i64: 16, 32>}, {pipeline_mode = #tpu.pipeline_mode<synchronous>, transform_indices = @transform_2, window_bounds = array<i64: 16, 1>}, {pipeline_mode = #tpu.pipeline_mode<synchronous>, transform_indices = @transform_3, window_bounds = array<i64: 8, 16>}, {pipeline_mode = #tpu.pipeline_mode<synchronous>, transform_indices = @transform_4, window_bounds = array<i64: 8, 1>}, {pipeline_mode = #tpu.pipeline_mode<synchronous>, transform_indices = @transform_5, window_bounds = array<i64: 8, 8>}, {pipeline_mode = #tpu.pipeline_mode<synchronous>, transform_indices = @transform_6, window_bounds = array<i64: 8, 1>}, {transform_indices = @transform_7, window_bounds = array<i64: 8, 128>}]} {
    %c0 = arith.constant 0 : index
    %c0_0 = arith.constant 0 : index
    %0 = vector.load %arg1[%c0, %c0_0] : memref<128x32xbf16, #tpu.memory_space<vmem>>, vector<128x32xbf16>
    %c0_1 = arith.constant 0 : index
    %c0_2 = arith.constant 0 : index
    %1 = vector.load %arg2[%c0_1, %c0_2] : memref<16x32xbf16, #tpu.memory_space<vmem>>, vector<16x32xbf16>
    %cst = arith.constant dense<0.000000e+00> : vector<16x128xf32>
    %2 = tpu.matmul %1, %0, %cst {dimension_numbers = #tpu.dot_dimension_numbers<[1], [1], [0], [0], [0, 0, 1, 0], [], []>} : vector<16x32xbf16>, vector<128x32xbf16>, vector<16x128xf32> -> vector<16x128xf32>
    %c0_3 = arith.constant 0 : index
    %c0_4 = arith.constant 0 : index
    %3 = vector.load %arg3[%c0_3, %c0_4] : memref<16x1xf32, #tpu.memory_space<vmem>>, vector<16x1xf32>
    %4 = vector.broadcast %3 : vector<16x1xf32> to vector<16x128xf32>
    %5 = arith.addf %2, %4 : vector<16x128xf32>
    %cst_5 = arith.constant 0.000000e+00 : f32
    %6 = vector.broadcast %cst_5 : f32 to vector<16x128xf32>
    %7 = arith.maximumf %5, %6 : vector<16x128xf32>
    %c0_6 = arith.constant 0 : index
    %c0_7 = arith.constant 0 : index
    %8 = vector.load %arg4[%c0_6, %c0_7] : memref<8x16xbf16, #tpu.memory_space<vmem>>, vector<8x16xbf16>
    %9 = arith.truncf %7 : vector<16x128xf32> to vector<16x128xbf16>
    %cst_8 = arith.constant dense<0.000000e+00> : vector<8x128xf32>
    %10 = tpu.matmul %8, %9, %cst_8 {dimension_numbers = #tpu.dot_dimension_numbers<[1], [0], [0], [1], [0, 0, 1, 1], [], []>} : vector<8x16xbf16>, vector<16x128xbf16>, vector<8x128xf32> -> vector<8x128xf32>
    %c0_9 = arith.constant 0 : index
    %c0_10 = arith.constant 0 : index
    %11 = vector.load %arg5[%c0_9, %c0_10] : memref<8x1xf32, #tpu.memory_space<vmem>>, vector<8x1xf32>
    %12 = vector.broadcast %11 : vector<8x1xf32> to vector<8x128xf32>
    %13 = arith.addf %10, %12 : vector<8x128xf32>
    %cst_11 = arith.constant 0.000000e+00 : f32
    %14 = vector.broadcast %cst_11 : f32 to vector<8x128xf32>
    %15 = arith.maximumf %13, %14 : vector<8x128xf32>
    %c0_12 = arith.constant 0 : index
    %c0_13 = arith.constant 0 : index
    %16 = vector.load %arg6[%c0_12, %c0_13] : memref<8x8xbf16, #tpu.memory_space<vmem>>, vector<8x8xbf16>
    %17 = arith.truncf %15 : vector<8x128xf32> to vector<8x128xbf16>
    %cst_14 = arith.constant dense<0.000000e+00> : vector<8x128xf32>
    %18 = tpu.matmul %16, %17, %cst_14 {dimension_numbers = #tpu.dot_dimension_numbers<[1], [0], [0], [1], [0, 0, 1, 1], [], []>} : vector<8x8xbf16>, vector<8x128xbf16>, vector<8x128xf32> -> vector<8x128xf32>
    %c0_15 = arith.constant 0 : index
    %c0_16 = arith.constant 0 : index
    %19 = vector.load %arg7[%c0_15, %c0_16] : memref<8x1xf32, #tpu.memory_space<vmem>>, vector<8x1xf32>
    %20 = vector.broadcast %19 : vector<8x1xf32> to vector<8x128xf32>
    %21 = arith.addf %18, %20 : vector<8x128xf32>
    %cst_17 = arith.constant 0.000000e+00 : f32
    %22 = vector.broadcast %cst_17 : f32 to vector<8x128xf32>
    %23 = arith.maximumf %21, %22 : vector<8x128xf32>
    %c0_18 = arith.constant 0 : index
    %c0_19 = arith.constant 0 : index
    %24 = vector.load %arg8[%c0_18, %c0_19] : memref<8x128xf32, #tpu.memory_space<vmem>>, vector<8x128xf32>
    tpu.vector_store %arg8[%c0_18, %c0_19], %23 {strides = array<i32>} : memref<8x128xf32, #tpu.memory_space<vmem>>, vector<8x128xf32>,
    return
  }
  func.func @transform_0(%arg0: i32) -> (i32, i32) {
    %c0_i32 = arith.constant 0 : i32
    %c0_i32_0 = arith.constant 0 : i32
    return %arg0, %c0_i32 : i32, i32
  }
  func.func @transform_1(%arg0: i32) -> (i32, i32) {
    %c0_i32 = arith.constant 0 : i32
    %c0_i32_0 = arith.constant 0 : i32
    %c0_i32_1 = arith.constant 0 : i32
    return %c0_i32, %c0_i32_0 : i32, i32
  }
  func.func @transform_2(%arg0: i32) -> (i32, i32) {
    %c0_i32 = arith.constant 0 : i32
    %c0_i32_0 = arith.constant 0 : i32
    %c0_i32_1 = arith.constant 0 : i32
    return %c0_i32, %c0_i32_0 : i32, i32
  }
  func.func @transform_3(%arg0: i32) -> (i32, i32) {
    %c0_i32 = arith.constant 0 : i32
    %c0_i32_0 = arith.constant 0 : i32
    %c0_i32_1 = arith.constant 0 : i32
    return %c0_i32, %c0_i32_0 : i32, i32
  }
  func.func @transform_4(%arg0: i32) -> (i32, i32) {
    %c0_i32 = arith.constant 0 : i32
    %c0_i32_0 = arith.constant 0 : i32
    %c0_i32_1 = arith.constant 0 : i32
    return %c0_i32, %c0_i32_0 : i32, i32
  }
  func.func @transform_5(%arg0: i32) -> (i32, i32) {
    %c0_i32 = arith.constant 0 : i32
    %c0_i32_0 = arith.constant 0 : i32
    %c0_i32_1 = arith.constant 0 : i32
    return %c0_i32, %c0_i32_0 : i32, i32
  }
  func.func @transform_6(%arg0: i32) -> (i32, i32) {
    %c0_i32 = arith.constant 0 : i32
    %c0_i32_0 = arith.constant 0 : i32
    %c0_i32_1 = arith.constant 0 : i32
    return %c0_i32, %c0_i32_0 : i32, i32
  }
  func.func @transform_7(%arg0: i32) -> (i32, i32) {
    %c0_i32 = arith.constant 0 : i32
    %c0_i32_0 = arith.constant 0 : i32
    return %c0_i32, %arg0 : i32, i32
  }
}

</mosaic_0001>

<llo_original>
// kernel: encoder_forward.1
$region0: #{encoder_forward.1}
  #allocation0 [shape = 'u32[]', space=smem, size = 0x4, offset = 0x4, fixed_abs, tag = 'smem constant byte address 0x4 - core index']
  #allocation1 [shape = 'u32[144,128]{1,0:T(1,128)}', space=vmem, size = 0x12000, scoped, tag = 'internal scratch']
  %s0 = inlined_call_operand.vmem [shape: bf16[256,32], index: 0, kind: input, shape index: {}]
  %s1 = inlined_call_operand.vmem [shape: bf16[16,32], index: 1, kind: input, shape index: {}]
  %s2 = inlined_call_operand.vmem [shape: f32[16,1], index: 2, kind: input, shape index: {}]
  %s3 = inlined_call_operand.vmem [shape: bf16[8,16], index: 3, kind: input, shape index: {}]
  %s4 = inlined_call_operand.vmem [shape: f32[8,1], index: 4, kind: input, shape index: {}]
  %s5 = inlined_call_operand.vmem [shape: bf16[8,8], index: 5, kind: input, shape index: {}]
  %s6 = inlined_call_operand.vmem [shape: f32[8,1], index: 6, kind: input, shape index: {}]
  %s7 = inlined_call_operand.vmem [shape: f32[8,256], index: 7, kind: output, shape index: {}]
  %s8 = sld [smem:[#allocation0]]
  $region61: #{encoder_forward.1} parent=0
    _
  %s10 = ssub.s32 1, %s8
  %s11 = scalar_select 0, %s10, %s8
  loop: start=0, step=1, limit=4
  $region2: #{encoder_forward.1} parent=0 // loop_pre_header
    _
  $region3: #{encoder_forward.1} parent=0 // loop_header
    %s13 = sphi 0, %s17
    %p14 = scmp.ge.s32.totalorder %s13, 4
    %s23 = sphi 0, %s25
    %s26 = sphi 0, %s23
    %s27 = sphi 0, %s26
    %s43 = sphi 0, %s27
    %s47 = sphi 0, %s47
    %s49 = sphi 0, %s47
    %s50 = sphi 0, %s49
    %s64 = sphi 0, %s50
    %s68 = sphi 0, %s68
    %s70 = sphi 0, %s68
    %s71 = sphi 0, %s70
    %s85 = sphi 0, %s71
    %s89 = sphi 0, %s89
    %s91 = sphi 0, %s89
    %s92 = sphi 0, %s91
    %s106 = sphi 0, %s92
    %s110 = sphi 0, %s110
    %s112 = sphi 0, %s110
    %s113 = sphi 0, %s112
    %s127 = sphi 0, %s113
    %s131 = sphi 0, %s131
    %s133 = sphi 0, %s131
    %s134 = sphi 0, %s133
    %s148 = sphi 0, %s134
    %s152 = sphi 0, %s152
    %s154 = sphi 0, %s152
    %s155 = sphi 0, %s154
    %s169 = sphi 0, %s155
    %s175 = sphi 0, %s177
    %s178 = sphi 0, %s175
    %s179 = sphi 0, %s178
    %s195 = sphi 0, %s179
  $region4: #{encoder_forward.1} parent=0 // loop_header_branch
    %16 = sbr.rel (%p14) target = $region8
  $region5: #{encoder_forward.1} parent=0 // loop_body
    %s18 = ssub.s32 %s13, 1
    %s19 = ssub.s32 %s13, 2
    %s20 = sadd.s32 %s13, 1
    %s21 = ssub.s32 %s13, %s20
    %p22 = scmp.eq.s32.totalorder %s21, 0
    %s24 = sadd.s32 %s23, 1
    %s25 = scalar_select %p22, %s23, %s24
    %p28 = pneg %p22
    %p29 = scmp.eq.s32.totalorder %s13, 1
    %p30 = por %p28, %p29
    %p31 = scmp.ne.s32.totalorder %s23, %s26
    %p32 = scmp.eq.s32.totalorder %s13, 0
    %p33 = por %p31, %p32
    %p34 = scmp.ne.s32.totalorder %s23, %s26
    %p35 = scmp.eq.s32.totalorder %s18, 1
    %p36 = por %p34, %p35
    %p37 = scmp.ne.s32.totalorder %s26, %s27
    %p38 = scmp.eq.s32.totalorder %s18, 0
    %p39 = por %p37, %p38
    %p40 = scmp.ne.s32.totalorder %s26, %s27
    %p41 = scmp.eq.s32.totalorder %s19, 1
    %p42 = por %p40, %p41
    %p44 = scmp.ne.s32.totalorder %s27, %s43
    %p45 = scmp.eq.s32.totalorder %s19, 0
    %p46 = por %p44, %p45
    %s48 = sadd.s32 %s47, 1
    %p51 = scmp.eq.s32.totalorder %s13, 1
    %p52 = scmp.ne.s32.totalorder %s47, %s49
    %p53 = scmp.eq.s32.totalorder %s13, 0
    %p54 = por %p52, %p53
    %p55 = scmp.ne.s32.totalorder %s47, %s49
    %p56 = scmp.eq.s32.totalorder %s18, 1
    %p57 = por %p55, %p56
    %p58 = scmp.ne.s32.totalorder %s49, %s50
    %p59 = scmp.eq.s32.totalorder %s18, 0
    %p60 = por %p58, %p59
    %p61 = scmp.ne.s32.totalorder %s49, %s50
    %p62 = scmp.eq.s32.totalorder %s19, 1
    %p63 = por %p61, %p62
    %p65 = scmp.ne.s32.totalorder %s50, %s64
    %p66 = scmp.eq.s32.totalorder %s19, 0
    %p67 = por %p65, %p66
    %s69 = sadd.s32 %s68, 1
    %p72 = scmp.eq.s32.totalorder %s13, 1
    %p73 = scmp.ne.s32.totalorder %s68, %s70
    %p74 = scmp.eq.s32.totalorder %s13, 0
    %p75 = por %p73, %p74
    %p76 = scmp.ne.s32.totalorder %s68, %s70
    %p77 = scmp.eq.s32.totalorder %s18, 1
    %p78 = por %p76, %p77
    %p79 = scmp.ne.s32.totalorder %s70, %s71
    %p80 = scmp.eq.s32.totalorder %s18, 0
    %p81 = por %p79, %p80
    %p82 = scmp.ne.s32.totalorder %s70, %s71
    %p83 = scmp.eq.s32.totalorder %s19, 1
    %p84 = por %p82, %p83
    %p86 = scmp.ne.s32.totalorder %s71, %s85
    %p87 = scmp.eq.s32.totalorder %s19, 0
    %p88 = por %p86, %p87
    %s90 = sadd.s32 %s89, 1
    %p93 = scmp.eq.s32.totalorder %s13, 1
    %p94 = scmp.ne.s32.totalorder %s89, %s91
    %p95 = scmp.eq.s32.totalorder %s13, 0
    %p96 = por %p94, %p95
    %p97 = scmp.ne.s32.totalorder %s89, %s91
    %p98 = scmp.eq.s32.totalorder %s18, 1
    %p99 = por %p97, %p98
    %p100 = scmp.ne.s32.totalorder %s91, %s92
    %p101 = scmp.eq.s32.totalorder %s18, 0
    %p102 = por %p100, %p101
    %p103 = scmp.ne.s32.totalorder %s91, %s92
    %p104 = scmp.eq.s32.totalorder %s19, 1
    %p105 = por %p103, %p104
    %p107 = scmp.ne.s32.totalorder %s92, %s106
    %p108 = scmp.eq.s32.totalorder %s19, 0
    %p109 = por %p107, %p108
    %s111 = sadd.s32 %s110, 1
    %p114 = scmp.eq.s32.totalorder %s13, 1
    %p115 = scmp.ne.s32.totalorder %s110, %s112
    %p116 = scmp.eq.s32.totalorder %s13, 0
    %p117 = por %p115, %p116
    %p118 = scmp.ne.s32.totalorder %s110, %s112
    %p119 = scmp.eq.s32.totalorder %s18, 1
    %p120 = por %p118, %p119
    %p121 = scmp.ne.s32.totalorder %s112, %s113
    %p122 = scmp.eq.s32.totalorder %s18, 0
    %p123 = por %p121, %p122
    %p124 = scmp.ne.s32.totalorder %s112, %s113
    %p125 = scmp.eq.s32.totalorder %s19, 1
    %p126 = por %p124, %p125
    %p128 = scmp.ne.s32.totalorder %s113, %s127
    %p129 = scmp.eq.s32.totalorder %s19, 0
    %p130 = por %p128, %p129
    %s132 = sadd.s32 %s131, 1
    %p135 = scmp.eq.s32.totalorder %s13, 1
    %p136 = scmp.ne.s32.totalorder %s131, %s133
    %p137 = scmp.eq.s32.totalorder %s13, 0
    %p138 = por %p136, %p137
    %p139 = scmp.ne.s32.totalorder %s131, %s133
    %p140 = scmp.eq.s32.totalorder %s18, 1
    %p141 = por %p139, %p140
    %p142 = scmp.ne.s32.totalorder %s133, %s134
    %p143 = scmp.eq.s32.totalorder %s18, 0
    %p144 = por %p142, %p143
    %p145 = scmp.ne.s32.totalorder %s133, %s134
    %p146 = scmp.eq.s32.totalorder %s19, 1
    %p147 = por %p145, %p146
    %p149 = scmp.ne.s32.totalorder %s134, %s148
    %p150 = scmp.eq.s32.totalorder %s19, 0
    %p151 = por %p149, %p150
    %s153 = sadd.s32 %s152, 1
    %p156 = scmp.eq.s32.totalorder %s13, 1
    %p157 = scmp.ne.s32.totalorder %s152, %s154
    %p158 = scmp.eq.s32.totalorder %s13, 0
    %p159 = por %p157, %p158
    %p160 = scmp.ne.s32.totalorder %s152, %s154
    %p161 = scmp.eq.s32.totalorder %s18, 1
    %p162 = por %p160, %p161
    %p163 = scmp.ne.s32.totalorder %s154, %s155
    %p164 = scmp.eq.s32.totalorder %s18, 0
    %p165 = por %p163, %p164
    %p166 = scmp.ne.s32.totalorder %s154, %s155
    %p167 = scmp.eq.s32.totalorder %s19, 1
    %p168 = por %p166, %p167
    %p170 = scmp.ne.s32.totalorder %s155, %s169
    %p171 = scmp.eq.s32.totalorder %s19, 0
    %p172 = por %p170, %p171
    %s173 = ssub.s32 %s13, %s20
    %p174 = scmp.eq.s32.totalorder %s173, 0
    %s176 = sadd.s32 %s175, 1
    %s177 = scalar_select %p174, %s175, %s176
    %p180 = pneg %p174
    %p181 = scmp.eq.s32.totalorder %s13, 1
    %p182 = por %p180, %p181
    %p183 = scmp.ne.s32.totalorder %s175, %s178
    %p184 = scmp.eq.s32.totalorder %s13, 0
    %p185 = por %p183, %p184
    %p186 = scmp.ne.s32.totalorder %s175, %s178
    %p187 = scmp.eq.s32.totalorder %s18, 1
    %p188 = por %p186, %p187
    %p189 = scmp.ne.s32.totalorder %s178, %s179
    %p190 = scmp.eq.s32.totalorder %s18, 0
    %p191 = por %p189, %p190
    %p192 = scmp.ne.s32.totalorder %s178, %s179
    %p193 = scmp.eq.s32.totalorder %s19, 1
    %p194 = por %p192, %p193
    %p196 = scmp.ne.s32.totalorder %s179, %s195
    %p197 = scmp.eq.s32.totalorder %s19, 0
    %p198 = por %p196, %p197
    %p199 = scmp.le.s32.totalorder 1, %s13
    %p200 = scmp.lt.s32.totalorder %s13, 3
    %p201 = pnand %p199, %p200
    %p202 = pneg %p201
    // Predicated region
    $region9: #{encoder_forward.1} parent=5 // pred_check
      _
    $region10: #{encoder_forward.1} parent=5 // pred_check_branch
      %204 = sbr.rel (%p201) target = $region12
    $region11: #{encoder_forward.1} parent=5 // pred_region
      %s205 = ssub.s32 %s13, 1
      // Predicated region
      $region13: #{encoder_forward.1} parent=11 // pred_check
        %p206 = pneg %p60
      $region14: #{encoder_forward.1} parent=11 // pred_check_branch
        %208 = sbr.rel (%p206) target = $region16
      $region15: #{encoder_forward.1} parent=11 // pred_region
        _
      $region16: #{encoder_forward.1} parent=11 // pred_fallthru
        _
      // Predicated region
      $region17: #{encoder_forward.1} parent=11 // pred_check
        %p209 = pneg %p81
      $region18: #{encoder_forward.1} parent=11 // pred_check_branch
        %211 = sbr.rel (%p209) target = $region20
      $region19: #{encoder_forward.1} parent=11 // pred_region
        _
      $region20: #{encoder_forward.1} parent=11 // pred_fallthru
        _
      // Predicated region
      $region21: #{encoder_forward.1} parent=11 // pred_check
        %p212 = pneg %p102
      $region22: #{encoder_forward.1} parent=11 // pred_check_branch
        %214 = sbr.rel (%p212) target = $region24
      $region23: #{encoder_forward.1} parent=11 // pred_region
        _
      $region24: #{encoder_forward.1} parent=11 // pred_fallthru
        _
      // Predicated region
      $region25: #{encoder_forward.1} parent=11 // pred_check
        %p215 = pneg %p123
      $region26: #{encoder_forward.1} parent=11 // pred_check_branch
        %217 = sbr.rel (%p215) target = $region28
      $region27: #{encoder_forward.1} parent=11 // pred_region
        _
      $region28: #{encoder_forward.1} parent=11 // pred_fallthru
        _
      // Predicated region
      $region29: #{encoder_forward.1} parent=11 // pred_check
        %p218 = pneg %p144
      $region30: #{encoder_forward.1} parent=11 // pred_check_branch
        %220 = sbr.rel (%p218) target = $region32
      $region31: #{encoder_forward.1} parent=11 // pred_region
        _
      $region32: #{encoder_forward.1} parent=11 // pred_fallthru
        _
      // Predicated region
      $region33: #{encoder_forward.1} parent=11 // pred_check
        %p221 = pneg %p165
      $region34: #{encoder_forward.1} parent=11 // pred_check_branch
        %223 = sbr.rel (%p221) target = $region36
      $region35: #{encoder_forward.1} parent=11 // pred_region
        _
      $region36: #{encoder_forward.1} parent=11 // pred_fallthru
        _
    $region12: #{encoder_forward.1} parent=5 // pred_fallthru
      _
    %p224 = scmp.lt.s32.totalorder %s13, 2
    // Predicated region
    $region37: #{encoder_forward.1} parent=5 // pred_check
      %p225 = pneg %p224
    $region38: #{encoder_forward.1} parent=5 // pred_check_branch
      %227 = sbr.rel (%p225) target = $region40
    $region39: #{encoder_forward.1} parent=5 // pred_region
      // Predicated region
      $region41: #{encoder_forward.1} parent=39 // pred_check
        %p228 = pneg %p33
      $region42: #{encoder_forward.1} parent=39 // pred_check_branch
        %230 = sbr.rel (%p228) target = $region44
      $region43: #{encoder_forward.1} parent=39 // pred_region
        %s231 = smul.u32 16, %s13
        %p232 = scmp.lt.s32.totalorder %s231, 31
        %s233 = scalar_select %p232, %s231, 31
        %s234 = smul.addr %s233, 4
        %s235 = scalar_lea.vmem %s0, %s234
        %s236 = smul.u32 16, %s13
      $region44: #{encoder_forward.1} parent=39 // pred_fallthru
        _
    $region40: #{encoder_forward.1} parent=5 // pred_fallthru
      _
    %p237 = scmp.le.s32.totalorder 1, %s13
    %p238 = scmp.lt.s32.totalorder %s13, 3
    %p239 = pnand %p237, %p238
    %p240 = pneg %p239
    // Predicated region
    $region45: #{encoder_forward.1} parent=5 // pred_check
      _
    $region46: #{encoder_forward.1} parent=5 // pred_check_branch
      %242 = sbr.rel (%p239) target = $region48
    $region47: #{encoder_forward.1} parent=5 // pred_region
      %s243 = ssub.s32 %s13, 1
      %s244 = smul.u32 16, %s18
      %p245 = scmp.lt.s32.totalorder %s244, 31
      %s246 = scalar_select %p245, %s244, 31
      %s247 = smul.addr %s246, 4
      %s248 = scalar_lea.vmem %s0, %s247
      %p249 = pneg %p39
      %p250 = pneg %p36
      %p251 = pneg %p60
      %p252 = pneg %p57
      %p253 = pneg %p81
      %p254 = pneg %p78
      %p255 = pneg %p102
      %p256 = pneg %p99
      %p257 = pneg %p123
      %p258 = pneg %p120
      %p259 = pneg %p144
      %p260 = pneg %p141
      %p261 = pneg %p165
      %p262 = pneg %p162
      %p263 = pneg %p191
      %p264 = pneg %p188
      %p265 = scmp.lt.s32.totalorder %s18, 1
      %s266 = scalar_select %p265, %s18, 1
      %s267 = smul.addr %s266, 8
      %s268 = scalar_lea.vmem %s7, %s267
      %s269 = smul.u32 16, %s18
      %p270 = scmp.lt.s32.totalorder %s269, 31
      %s271 = scalar_select %p270, %s269, 31
      %s272 = smul.addr %s271, 4
      %s273 = scalar_lea.vmem %s0, %s272
      %s274 = smul.u32 16, %s18
      %p275 = scmp.lt.s32.totalorder %s18, 1
      %s276 = scalar_select %p275, %s18, 1
      %s277 = smul.addr %s276, 8
      %s278 = scalar_lea.vmem %s7, %s277
      %v280 = vld [vmem:[%s273] sm:$0xf]
      %v281 = vld [vmem:[%s273 + $0x4] sm:$0xf]
      %v282 = vld [vmem:[%s273 + $0x8] sm:$0xf]
      %v283 = vld [vmem:[%s273 + $0xc] sm:$0xf]
      %v284 = vld [vmem:[%s273 + $0x10] sm:$0xf]
      %v285 = vld [vmem:[%s273 + $0x14] sm:$0xf]
      %v286 = vld [vmem:[%s273 + $0x18] sm:$0xf]
      %v287 = vld [vmem:[%s273 + $0x1c] sm:$0xf]
      %v288 = vld [vmem:[%s273 + $0x20] sm:$0xf]
      %v289 = vld [vmem:[%s273 + $0x24] sm:$0xf]
      %v290 = vld [vmem:[%s273 + $0x28] sm:$0xf]
      %v291 = vld [vmem:[%s273 + $0x2c] sm:$0xf]
      %v292 = vld [vmem:[%s273 + $0x30] sm:$0xf]
      %v293 = vld [vmem:[%s273 + $0x34] sm:$0xf]
      %v294 = vld [vmem:[%s273 + $0x38] sm:$0xf]
      %v295 = vld [vmem:[%s273 + $0x3c] sm:$0xf]
      %v296 = vld [vmem:[%s1] sm:$0xf]
      %v297 = vld [vmem:[%s1 + $0x4] sm:$0xf]
      %v298 = vld [vmem:[%s2] sm:$0xff]
      %v299 = vld [vmem:[%s2 + $0x8] sm:$0xff]
      %301 = vset.pattern.permute.xlu0 0
      %302 = vperm.xlu0 %301, %v298
      %v303 = vpop.permute.xlu0 %302
      %306 = vset.pattern.permute.xlu0 0
      %307 = vperm.xlu0 %306, %v299
      %v308 = vpop.permute.xlu0 %307
      %v312 = vunpack.c.l.b16 %v296
      %v313 = vunpack.c.l.b16 %v297
      %v314 = vpack.c.b16 %v313, %v312
      %v331 = vunpack.c.l.b16 %v280
      %v332 = vunpack.c.l.b16 %v281
      %v333 = vunpack.c.l.b16 %v282
      %v334 = vunpack.c.l.b16 %v283
      %v335 = vunpack.c.l.b16 %v284
      %v336 = vunpack.c.l.b16 %v285
      %v337 = vunpack.c.l.b16 %v286
      %v338 = vunpack.c.l.b16 %v287
      %v339 = vunpack.c.l.b16 %v288
      %v340 = vunpack.c.l.b16 %v289
      %v341 = vunpack.c.l.b16 %v290
      %v342 = vunpack.c.l.b16 %v291
      %v343 = vunpack.c.l.b16 %v292
      %v344 = vunpack.c.l.b16 %v293
      %v345 = vunpack.c.l.b16 %v294
      %v346 = vunpack.c.l.b16 %v295
      %v347 = vpack.c.b16 %v332, %v331
      %v348 = vpack.c.b16 %v334, %v333
      %v349 = vpack.c.b16 %v336, %v335
      %v350 = vpack.c.b16 %v338, %v337
      %v351 = vpack.c.b16 %v340, %v339
      %v352 = vpack.c.b16 %v342, %v341
      %v353 = vpack.c.b16 %v344, %v343
      %v354 = vpack.c.b16 %v346, %v345
      %vm355 = vcmask 261120
      %v357 = vsel %vm355, %v314, 0
      %v360 = vsel %vm355, %v347, 0
      %v363 = vsel %vm355, %v348, 0
      %v366 = vsel %vm355, %v349, 0
      %v369 = vsel %vm355, %v350, 0
      %v372 = vsel %vm355, %v351, 0
      %v375 = vsel %vm355, %v352, 0
      %v378 = vsel %vm355, %v353, 0
      %v381 = vsel %vm355, %v354, 0
      %383 = vmatprep.subr.bf16.mxu0 0
      %384 = vmatpush1.bf16.xpose.msra.mxu0 %v360
      %385 = vmatprep.subr.bf16.mxu0 0
      %386 = vmatpush1.bf16.xpose.msra.mxu0 %v363
      %387 = vmatprep.subr.bf16.mxu0 0
      %388 = vmatpush1.bf16.xpose.msra.mxu0 %v366
      %389 = vmatprep.subr.bf16.mxu0 0
      %390 = vmatpush1.bf16.xpose.msra.mxu0 %v369
      %391 = vmatprep.subr.bf16.mxu0 0
      %392 = vmatpush1.bf16.xpose.msra.mxu0 %v372
      %393 = vmatprep.subr.bf16.mxu0 0
      %394 = vmatpush1.bf16.xpose.msra.mxu0 %v375
      %395 = vmatprep.subr.bf16.mxu0 0
      %396 = vmatpush1.bf16.xpose.msra.mxu0 %v378
      %397 = vmatprep.subr.bf16.mxu0 0
      %398 = vmatpush1.bf16.xpose.msra.mxu0 %v381
      %399 = vmatprep.subr.bf16.mxu0 0
      %400 = vmatpush1.bf16.xpose.msra.mxu0 0
      %401 = vmatprep.subr.bf16.mxu0 0
      %402 = vmatpush1.bf16.xpose.msra.mxu0 0
      %403 = vmatprep.subr.bf16.mxu0 0
      %404 = vmatpush1.bf16.xpose.msra.mxu0 0
      %405 = vmatprep.subr.bf16.mxu0 0
      %406 = vmatpush1.bf16.xpose.msra.mxu0 0
      %407 = vmatprep.subr.bf16.mxu0 0
      %408 = vmatpush1.bf16.xpose.msra.mxu0 0
      %409 = vmatprep.subr.bf16.mxu0 0
      %410 = vmatpush1.bf16.xpose.msra.mxu0 0
      %411 = vmatprep.subr.bf16.mxu0 0
      %412 = vmatpush1.bf16.xpose.msra.mxu0 0
      %413 = vmatprep.subr.bf16.mxu0 0
      %414 = vmatpush1.bf16.xpose.msra.mxu0 0
      %415 = vmatprep.mubr.bf16.mxu0 0
      %416 = vmatmul.mubr.bf16.gmra.mrb[0].mxu0 %v357
      %v417 = vpop.f32.mrb[0].mxu0
      %v418 = vadd.f32 %v303, %v417
      %v419 = vpop.f32.mrb[0].mxu0
      %v420 = vpop.f32.mrb[0].mxu0
      %v421 = vadd.f32 %v308, %v420
      %v422 = vpop.f32.mrb[0].mxu0
      %423 = vdwg.mxu0
      %v424 = vmax.f32 %v418, 0.0
      %v425 = vmax.f32 %v421, 0.0
      %v426 = vld [vmem:[%s3] sm:$0xf]
      %v427 = vpack.c.bf16 %v425, %v424
      %v428 = vld [vmem:[%s4] sm:$0xff]
      %430 = vset.pattern.permute.xlu0 0
      %431 = vperm.xlu0 %430, %v428
      %v432 = vpop.permute.xlu0 %431
      %vm434 = vcmask 130048
      %v436 = vsel %vm434, %v426, 0
      %438 = vmatprep.subr.bf16.mxu0 0
      %439 = vmatpush1.bf16.msra.mxu0 %v427
      %440 = vmatprep.subr.bf16.mxu0 0
      %441 = vmatpush1.bf16.msra.mxu0 0
      %442 = vmatprep.subr.bf16.mxu0 0
      %443 = vmatpush1.bf16.msra.mxu0 0
      %444 = vmatprep.subr.bf16.mxu0 0
      %445 = vmatpush1.bf16.msra.mxu0 0
      %446 = vmatprep.subr.bf16.mxu0 0
      %447 = vmatpush1.bf16.msra.mxu0 0
      %448 = vmatprep.subr.bf16.mxu0 0
      %449 = vmatpush1.bf16.msra.mxu0 0
      %450 = vmatprep.subr.bf16.mxu0 0
      %451 = vmatpush1.bf16.msra.mxu0 0
      %452 = vmatprep.subr.bf16.mxu0 0
      %453 = vmatpush1.bf16.msra.mxu0 0
      %454 = vmatprep.subr.bf16.mxu0 0
      %455 = vmatpush1.bf16.msra.mxu0 0
      %456 = vmatprep.subr.bf16.mxu0 0
      %457 = vmatpush1.bf16.msra.mxu0 0
      %458 = vmatprep.subr.bf16.mxu0 0
      %459 = vmatpush1.bf16.msra.mxu0 0
      %460 = vmatprep.subr.bf16.mxu0 0
      %461 = vmatpush1.bf16.msra.mxu0 0
      %462 = vmatprep.subr.bf16.mxu0 0
      %463 = vmatpush1.bf16.msra.mxu0 0
      %464 = vmatprep.subr.bf16.mxu0 0
      %465 = vmatpush1.bf16.msra.mxu0 0
      %466 = vmatprep.subr.bf16.mxu0 0
      %467 = vmatpush1.bf16.msra.mxu0 0
      %468 = vmatprep.subr.bf16.mxu0 0
      %469 = vmatpush1.bf16.msra.mxu0 0
      %470 = vmatprep.mubr.bf16.mxu0 0
      %471 = vmatmul.mubr.bf16.gmra.mrb[0].mxu0 %v436
      %v472 = vpop.f32.mrb[0].mxu0
      %v473 = vadd.f32 %v432, %v472
      %v474 = vpop.f32.mrb[0].mxu0
      %v475 = vpop.f32.mrb[0].mxu0
      %v476 = vpop.f32.mrb[0].mxu0
      %477 = vdwg.mxu0
      %v478 = vmax.f32 %v473, 0.0
      %v479 = vld [vmem:[%s5] sm:$0xf]
      %v480 = vpack.c.bf16 %v478, %v478
      %v481 = vld [vmem:[%s6] sm:$0xff]
      %483 = vset.pattern.permute.xlu0 0
      %484 = vperm.xlu0 %483, %v481
      %v485 = vpop.permute.xlu0 %484
      %vm487 = vcmask 64512
      %v489 = vsel %vm487, %v479, 0
      %vm491 = vcmask 1043456
      %v493 = vsel %vm491, %v480, 0
      %495 = vmatprep.subr.bf16.mxu0 0
      %496 = vmatpush1.bf16.msra.mxu0 %v493
      %497 = vmatprep.subr.bf16.mxu0 0
      %498 = vmatpush1.bf16.msra.mxu0 0
      %499 = vmatprep.subr.bf16.mxu0 0
      %500 = vmatpush1.bf16.msra.mxu0 0
      %501 = vmatprep.subr.bf16.mxu0 0
      %502 = vmatpush1.bf16.msra.mxu0 0
      %503 = vmatprep.subr.bf16.mxu0 0
      %504 = vmatpush1.bf16.msra.mxu0 0
      %505 = vmatprep.subr.bf16.mxu0 0
      %506 = vmatpush1.bf16.msra.mxu0 0
      %507 = vmatprep.subr.bf16.mxu0 0
      %508 = vmatpush1.bf16.msra.mxu0 0
      %509 = vmatprep.subr.bf16.mxu0 0
      %510 = vmatpush1.bf16.msra.mxu0 0
      %511 = vmatprep.subr.bf16.mxu0 0
      %512 = vmatpush1.bf16.msra.mxu0 0
      %513 = vmatprep.subr.bf16.mxu0 0
      %514 = vmatpush1.bf16.msra.mxu0 0
      %515 = vmatprep.subr.bf16.mxu0 0
      %516 = vmatpush1.bf16.msra.mxu0 0
      %517 = vmatprep.subr.bf16.mxu0 0
      %518 = vmatpush1.bf16.msra.mxu0 0
      %519 = vmatprep.subr.bf16.mxu0 0
      %520 = vmatpush1.bf16.msra.mxu0 0
      %521 = vmatprep.subr.bf16.mxu0 0
      %522 = vmatpush1.bf16.msra.mxu0 0
      %523 = vmatprep.subr.bf16.mxu0 0
      %524 = vmatpush1.bf16.msra.mxu0 0
      %525 = vmatprep.subr.bf16.mxu0 0
      %526 = vmatpush1.bf16.msra.mxu0 0
      %527 = vmatprep.mubr.bf16.mxu0 0
      %528 = vmatmul.mubr.bf16.gmra.mrb[0].mxu0 %v489
      %v529 = vpop.f32.mrb[0].mxu0
      %v530 = vadd.f32 %v485, %v529
      %v531 = vpop.f32.mrb[0].mxu0
      %v532 = vpop.f32.mrb[0].mxu0
      %v533 = vpop.f32.mrb[0].mxu0
      %534 = vdwg.mxu0
      %v535 = vmax.f32 %v530, 0.0
      %536 = vst [vmem:[%s278] sm:$0xff] %v535
      %p537 = scmp.lt.s32.totalorder %s18, 1
      %s538 = scalar_select %p537, %s18, 1
      %s539 = smul.addr %s538, 8
      %s540 = scalar_lea.vmem %s7, %s539
      // Predicated region
      $region49: #{encoder_forward.1} parent=47 // pred_check
        %p541 = pneg %p188
      $region50: #{encoder_forward.1} parent=47 // pred_check_branch
        %543 = sbr.rel (%p541) target = $region52
      $region51: #{encoder_forward.1} parent=47 // pred_region
        _
      $region52: #{encoder_forward.1} parent=47 // pred_fallthru
        _
    $region48: #{encoder_forward.1} parent=5 // pred_fallthru
      _
    %p544 = scmp.le.s32.totalorder 2, %s13
    // Predicated region
    $region53: #{encoder_forward.1} parent=5 // pred_check
      %p545 = pneg %p544
    $region54: #{encoder_forward.1} parent=5 // pred_check_branch
      %547 = sbr.rel (%p545) target = $region56
    $region55: #{encoder_forward.1} parent=5 // pred_region
      %s548 = ssub.s32 %s13, 2
      // Predicated region
      $region57: #{encoder_forward.1} parent=55 // pred_check
        %p549 = pneg %p194
      $region58: #{encoder_forward.1} parent=55 // pred_check_branch
        %551 = sbr.rel (%p549) target = $region60
      $region59: #{encoder_forward.1} parent=55 // pred_region
        %p552 = scmp.lt.s32.totalorder %s19, 1
        %s553 = scalar_select %p552, %s19, 1
        %s554 = smul.addr %s553, 8
        %s555 = scalar_lea.vmem %s7, %s554
      $region60: #{encoder_forward.1} parent=55 // pred_fallthru
        _
    $region56: #{encoder_forward.1} parent=5 // pred_fallthru
      _
  $region6: #{encoder_forward.1} parent=0 // loop_footer
    %s17 = sadd.s32 1, %s13
  $region7: #{encoder_forward.1} parent=0 // loop_footer_branch
    %12 = sbr.rel target = $region3
  $region8: #{encoder_forward.1} parent=0 // loop_exit
    _

</llo_original>
